<compile_context>
chip_gen: v7x
topology: tpu7x:2x2x1
jax: 0.10.0
libtpu: 0.0.40
codegen_flags: <defaults>
</compile_context>

<pallas_src>
import functools

import jax
import jax.numpy as jnp
from jax.experimental import pallas as pl
from jax.experimental.pallas import tpu as pltpu

LN_EPS = 1e-5  # torch.nn.LayerNorm default


def _pick_token_tile(num_patches, target):
    """Largest legal token tile <= target.

    Legal tiles: divisors of num_patches that are multiples of 8 (sublane-dense
    stores), or num_patches itself (a full-extent block dim is always legal).
    """
    target = max(1, target)
    if num_patches <= target:
        return num_patches
    best = 0
    for d in range(8, target + 1, 8):
        if num_patches % d == 0:
            best = d
    return best if best else num_patches


def _patch_embed_ln_kernel(x_ref, w_ref, p_ref, out_ref, *, e_real):
    # x_ref  : (1, tok_tile, K)      im2col tokens, K = C*ph*pw (lane-dense)
    # w_ref  : (K, E_pad)            conv weight as one contraction slab (resident)
    # p_ref  : (3, E_pad)            rows: bias, gamma, beta (zero-padded past E)
    # out_ref: (1, tok_tile, E_pad)  lane- and sublane-dense
    e_pad = out_ref.shape[-1]
    pad_lanes = e_pad - e_real
    inv_e = 1.0 / float(e_real)

    # Single big-K MXU contraction for the whole step's tokens (f32 accumulate).
    x = jnp.dot(x_ref[0], w_ref[...], preferred_element_type=jnp.float32)
    x = x + p_ref[0:1, :]                      # bias; padded lanes stay exactly 0

    # LayerNorm over the whole (tok_tile, E_pad) slab, two-pass stats in f32.
    # Padded lanes hold x == 0, so they add pad_lanes * mean^2 to the centered
    # sum of squares; subtract that out for an exact variance over the real E.
    mean = jnp.sum(x, axis=-1, keepdims=True) * inv_e
    d = x - mean
    ssq = jnp.sum(d * d, axis=-1, keepdims=True)
    var = (ssq - float(pad_lanes) * mean * mean) * inv_e
    xn = d * jax.lax.rsqrt(var + LN_EPS)

    # gamma/beta are zero in the padded lanes -> padded output lanes are 0.
    out_ref[0] = (xn * p_ref[1:2, :] + p_ref[2:3, :]).astype(out_ref.dtype)


def embeddings2d_forward(x, conv_w, conv_b, ln_gamma, ln_beta,
                         patch_size=4, img_size=16,
                         target_tokens=512, compute_dtype=None,
                         out_dtype=jnp.float32,
                         vmem_budget_bytes=20 * 2**20):
    """x: (B, C, H, W) NCHW. Returns ((B, num_patches, E), patched_dimensions).

    compute_dtype: set to jnp.bfloat16 to halve matmul-input DMA bytes -- valid
    on v5e, v6e and v7x (the MXU accepts bf16 on all three; LayerNorm math is
    always f32).  out_dtype=jnp.bfloat16 halves output writeback (the dominant
    HBM traffic at these FLOP counts).
    vmem_budget_bytes: per-step tile budget; the default (~20 MiB) is sized so
    double-buffered tiles fit comfortably inside v7x's 64 MiB VMEM.
    """
    B, C, H, W = x.shape
    # TODO(synk): torchvision transforms.Resize (bilinear) is identity here since
    # the input spatial size already equals img_size; a general resize would be
    # done with jax.image.resize in glue, outside the kernel.
    assert H == img_size and W == img_size, "example assumes identity resize"

    ph = pw = patch_size
    pad_h = (-H) % ph
    pad_w = (-W) % pw
    if pad_h or pad_w:   # maybe_pad: zero-pad bottom/right (no-op for the demo)
        x = jnp.pad(x, ((0, 0), (0, 0), (0, pad_h), (0, pad_w)))
    Hpad, Wpad = H + pad_h, W + pad_w
    Hp, Wp = Hpad // ph, Wpad // pw
    num_patches = Hp * Wp

    E = conv_w.shape[0]
    E_pad = ((E + 127) // 128) * 128
    K = C * ph * pw

    # One-time im2col in glue (single cheap pass over the small input tensor):
    # NCHW -> (B, C, Hp, ph, Wp, pw) -> (B, Hp, Wp, C, ph, pw) -> (B, P, K).
    # Token order (hp, wp) matches torch's flatten(2).transpose(1, 2).
    xcol = x.reshape(B, C, Hp, ph, Wp, pw).transpose(0, 2, 4, 1, 3, 5)
    xcol = xcol.reshape(B, num_patches, K)

    # Conv weight (E, C, ph, pw) -> (K, E_pad), matching the (c, i, j) im2col order.
    w2 = conv_w.transpose(1, 2, 3, 0).reshape(K, E)
    w2 = jnp.pad(w2.astype(jnp.float32), ((0, 0), (0, E_pad - E)))

    if compute_dtype is not None:
        xcol = xcol.astype(compute_dtype)
        w2 = w2.astype(compute_dtype)

    # bias / gamma / beta stacked into one resident (3, E_pad) buffer (f32).
    params = jnp.stack([
        jnp.pad(conv_b.astype(jnp.float32), (0, E_pad - E)),
        jnp.pad(ln_gamma.astype(jnp.float32), (0, E_pad - E)),
        jnp.pad(ln_beta.astype(jnp.float32), (0, E_pad - E)),
    ], axis=0)

    in_bytes = jnp.dtype(compute_dtype or jnp.float32).itemsize
    out_bytes = jnp.dtype(out_dtype).itemsize

    # Per-token VMEM cost (double-buffered in/out + f32 intermediates); clamp the
    # requested token tile to the budget so the tile fits on v7x's smaller VMEM.
    per_tok = 2 * K * in_bytes + 2 * E_pad * out_bytes + 3 * E_pad * 4
    budget_tokens = max(8, vmem_budget_bytes // per_tok)
    tok_tile = _pick_token_tile(num_patches, min(target_tokens, budget_tokens))

    # Keep >= 2 grid steps so both v7x TensorCores get work even when B == 1.
    if B * (num_patches // tok_tile) < 2:
        for d in range(tok_tile - 8, 7, -8):
            if num_patches % d == 0:
                tok_tile = d
                break

    grid = (B, num_patches // tok_tile)

    needed = (2 * tok_tile * K * in_bytes          # double-buffered input tile
              + 2 * tok_tile * E_pad * out_bytes   # double-buffered output tile
              + 2 * K * E_pad * in_bytes           # resident weight (conservative)
              + 2 * 3 * E_pad * 4                  # params
              + 4 * tok_tile * E_pad * 4)          # f32 intermediates / spill room
    vmem_limit = int(min(max(needed * 2, 32 * 2**20), 48 * 2**20))

    kernel = functools.partial(_patch_embed_ln_kernel, e_real=E)

    out = pl.pallas_call(
        kernel,
        out_shape=jax.ShapeDtypeStruct((B, num_patches, E_pad), out_dtype),
        grid_spec=pltpu.PrefetchScalarGridSpec(
            num_scalar_prefetch=0,
            grid=grid,
            in_specs=[
                pl.BlockSpec((1, tok_tile, K), lambda b, t: (b, t, 0)),
                pl.BlockSpec((K, E_pad), lambda b, t: (0, 0)),
                pl.BlockSpec((3, E_pad), lambda b, t: (0, 0)),
            ],
            out_specs=pl.BlockSpec((1, tok_tile, E_pad),
                                   lambda b, t: (b, t, 0)),
        ),
        compiler_params=pltpu.CompilerParams(
            dimension_semantics=("parallel", "parallel"),
            vmem_limit_bytes=vmem_limit),
    )(xcol, w2, params)

    # TODO(synk): when E % 128 != 0 this slice costs one extra HBM pass over the
    # activations; keep E_pad downstream (or choose E % 128 == 0) to avoid it.
    out = out[..., :E]
    return out, (Hp, Wp)


def _reference(x, conv_w, conv_b, ln_gamma, ln_beta, patch_size=4):
    # Pure-JAX reference: conv (stride==kernel) + flatten/transpose + LayerNorm.
    y = jax.lax.conv_general_dilated(
        x, conv_w,
        window_strides=(patch_size, patch_size),
        padding="VALID",
        dimension_numbers=("NCHW", "OIHW", "NCHW"),
    ) + conv_b[None, :, None, None]
    B, E, Hp, Wp = y.shape
    y = y.reshape(B, E, Hp * Wp).transpose(0, 2, 1)   # (B, P, E)
    mean = jnp.mean(y, axis=-1, keepdims=True)
    var = jnp.mean(jnp.square(y - mean), axis=-1, keepdims=True)
    return (y - mean) * jax.lax.rsqrt(var + LN_EPS) * ln_gamma + ln_beta


if __name__ == "__main__":
    # Small, module-consistent shapes: batch=2, channels=4, img_size=16,
    # patch_size=4, embed_dim=32 -> 16 patches per image.
    B, C, IMG, P, E = 2, 4, 16, 4, 32
    key = jax.random.PRNGKey(0)
    kx, kw, kb, kg, kbe = jax.random.split(key, 5)

    x = jax.random.normal(kx, (B, C, IMG, IMG), dtype=jnp.float32)
    conv_w = jax.random.normal(kw, (E, C, P, P), dtype=jnp.float32) * 0.05
    conv_b = jax.random.normal(kb, (E,), dtype=jnp.float32) * 0.05
    ln_gamma = 1.0 + 0.1 * jax.random.normal(kg, (E,), dtype=jnp.float32)
    ln_beta = 0.1 * jax.random.normal(kbe, (E,), dtype=jnp.float32)

    out, patched_dims = embeddings2d_forward(
        x, conv_w, conv_b, ln_gamma, ln_beta, patch_size=P, img_size=IMG)
    out = jax.block_until_ready(out)

    ref = _reference(x, conv_w, conv_b, ln_gamma, ln_beta, patch_size=P)
    assert out.shape == (B, (IMG // P) * (IMG // P), E)
    assert patched_dims == (IMG // P, IMG // P)
    assert jnp.allclose(out, ref, atol=1e-4, rtol=1e-4)

    print("KERNEL_OK")
</pallas_src>

<mosaic_0001>
module attributes {stable_mosaic.version = 11 : i64} {
  func.func @_patch_embed_ln_kernel(%arg0: i32, %arg1: i32, %arg2: memref<1x16x64xf32, #tpu.memory_space<vmem>>, %arg3: memref<64x128xf32, #tpu.memory_space<vmem>>, %arg4: memref<3x128xf32, #tpu.memory_space<vmem>>, %arg5: memref<1x16x128xf32, #tpu.memory_space<vmem>>) attributes {dimension_semantics = [#tpu.dimension_semantics<parallel>, #tpu.dimension_semantics<parallel>], iteration_bounds = array<i64: 2, 1>, scalar_prefetch = 0 : i64, scratch_operands = 0 : i64, tpu.core_type = #tpu.core_type<tc>, window_params = [{transform_indices = @transform_0, window_bounds = array<i64: 1, 16, 64>}, {pipeline_mode = #tpu.pipeline_mode<synchronous>, transform_indices = @transform_1, window_bounds = array<i64: 64, 128>}, {pipeline_mode = #tpu.pipeline_mode<synchronous>, transform_indices = @transform_2, window_bounds = array<i64: 3, 128>}, {transform_indices = @transform_3, window_bounds = array<i64: 1, 16, 128>}]} {
    %c0 = arith.constant 0 : index
    %c0_0 = arith.constant 0 : index
    %c0_1 = arith.constant 0 : index
    %0 = vector.load %arg2[%c0, %c0_0, %c0_1] : memref<1x16x64xf32, #tpu.memory_space<vmem>>, vector<1x16x64xf32>
    %1 = vector.shape_cast %0 : vector<1x16x64xf32> to vector<16x64xf32>
    %c0_2 = arith.constant 0 : index
    %c0_3 = arith.constant 0 : index
    %2 = vector.load %arg3[%c0_2, %c0_3] : memref<64x128xf32, #tpu.memory_space<vmem>>, vector<64x128xf32>
    %cst = arith.constant dense<0.000000e+00> : vector<16x128xf32>
    %3 = tpu.matmul %1, %2, %cst {dimension_numbers = #tpu.dot_dimension_numbers<[1], [0], [0], [1], [0, 0, 1, 1], [], []>} : vector<16x64xf32>, vector<64x128xf32>, vector<16x128xf32> -> vector<16x128xf32>
    %c0_4 = arith.constant 0 : index
    %c0_5 = arith.constant 0 : index
    %4 = vector.load %arg4[%c0_4, %c0_5] : memref<3x128xf32, #tpu.memory_space<vmem>>, vector<1x128xf32>
    %5 = vector.broadcast %4 : vector<1x128xf32> to vector<16x128xf32>
    %6 = arith.addf %3, %5 : vector<16x128xf32>
    %cst_6 = arith.constant dense<0.000000e+00> : vector<16xf32>
    %7 = vector.multi_reduction <add>, %6, %cst_6 [1] : vector<16x128xf32> to vector<16xf32>
    %8 = vector.shape_cast %7 : vector<16xf32> to vector<16x1xf32>
    %cst_7 = arith.constant 3.125000e-02 : f32
    %9 = vector.broadcast %cst_7 : f32 to vector<16x1xf32>
    %10 = arith.mulf %8, %9 : vector<16x1xf32>
    %11 = vector.broadcast %10 : vector<16x1xf32> to vector<16x128xf32>
    %12 = arith.subf %6, %11 : vector<16x128xf32>
    %13 = arith.mulf %12, %12 : vector<16x128xf32>
    %cst_8 = arith.constant dense<0.000000e+00> : vector<16xf32>
    %14 = vector.multi_reduction <add>, %13, %cst_8 [1] : vector<16x128xf32> to vector<16xf32>
    %15 = vector.shape_cast %14 : vector<16xf32> to vector<16x1xf32>
    %cst_9 = arith.constant 9.600000e+01 : f32
    %16 = vector.broadcast %cst_9 : f32 to vector<16x1xf32>
    %17 = arith.mulf %16, %10 : vector<16x1xf32>
    %18 = arith.mulf %17, %10 : vector<16x1xf32>
    %19 = arith.subf %15, %18 : vector<16x1xf32>
    %cst_10 = arith.constant 3.125000e-02 : f32
    %20 = vector.broadcast %cst_10 : f32 to vector<16x1xf32>
    %21 = arith.mulf %19, %20 : vector<16x1xf32>
    %cst_11 = arith.constant 9.99999974E-6 : f32
    %22 = vector.broadcast %cst_11 : f32 to vector<16x1xf32>
    %23 = arith.addf %21, %22 : vector<16x1xf32>
    %24 = math.rsqrt %23 : vector<16x1xf32>
    %25 = vector.broadcast %24 : vector<16x1xf32> to vector<16x128xf32>
    %26 = arith.mulf %12, %25 : vector<16x128xf32>
    %c1 = arith.constant 1 : index
    %c0_12 = arith.constant 0 : index
    %27 = vector.load %arg4[%c1, %c0_12] : memref<3x128xf32, #tpu.memory_space<vmem>>, vector<1x128xf32>
    %28 = vector.broadcast %27 : vector<1x128xf32> to vector<16x128xf32>
    %29 = arith.mulf %26, %28 : vector<16x128xf32>
    %c2 = arith.constant 2 : index
    %c0_13 = arith.constant 0 : index
    %30 = vector.load %arg4[%c2, %c0_13] : memref<3x128xf32, #tpu.memory_space<vmem>>, vector<1x128xf32>
    %31 = vector.broadcast %30 : vector<1x128xf32> to vector<16x128xf32>
    %32 = arith.addf %29, %31 : vector<16x128xf32>
    %c0_14 = arith.constant 0 : index
    %c0_15 = arith.constant 0 : index
    %c0_16 = arith.constant 0 : index
    %33 = vector.load %arg5[%c0_14, %c0_15, %c0_16] : memref<1x16x128xf32, #tpu.memory_space<vmem>>, vector<1x16x128xf32>
    %34 = vector.shape_cast %33 : vector<1x16x128xf32> to vector<16x128xf32>
    %35 = vector.shape_cast %32 : vector<16x128xf32> to vector<1x16x128xf32>
    tpu.vector_store %arg5[%c0_14, %c0_15, %c0_16], %35 {strides = array<i32>} : memref<1x16x128xf32, #tpu.memory_space<vmem>>, vector<1x16x128xf32>,
    return
  }
  func.func @transform_0(%arg0: i32, %arg1: i32) -> (i32, i32, i32) {
    %c0_i32 = arith.constant 0 : i32
    %c0_i32_0 = arith.constant 0 : i32
    return %arg0, %arg1, %c0_i32 : i32, i32, i32
  }
  func.func @transform_1(%arg0: i32, %arg1: i32) -> (i32, i32) {
    %c0_i32 = arith.constant 0 : i32
    %c0_i32_0 = arith.constant 0 : i32
    %c0_i32_1 = arith.constant 0 : i32
    return %c0_i32, %c0_i32_0 : i32, i32
  }
  func.func @transform_2(%arg0: i32, %arg1: i32) -> (i32, i32) {
    %c0_i32 = arith.constant 0 : i32
    %c0_i32_0 = arith.constant 0 : i32
    %c0_i32_1 = arith.constant 0 : i32
    return %c0_i32, %c0_i32_0 : i32, i32
  }
  func.func @transform_3(%arg0: i32, %arg1: i32) -> (i32, i32, i32) {
    %c0_i32 = arith.constant 0 : i32
    %c0_i32_0 = arith.constant 0 : i32
    return %arg0, %arg1, %c0_i32 : i32, i32, i32
  }
}

</mosaic_0001>

<llo_original>
// kernel: tpu_custom_call.1
$region0: #{tpu_custom_call.1}
  #allocation0 [shape = 'u32[]', space=smem, size = 0x4, offset = 0x4, fixed_abs, tag = 'smem constant byte address 0x4 - core index']
  #allocation1 [shape = 'u32[144,128]{1,0:T(1,128)}', space=vmem, size = 0x12000, scoped, tag = 'internal scratch']
  %s0 = inlined_call_operand.hbm [shape: f32[2,16,64], index: 0, kind: input, shape index: {}]
  %s1 = inlined_call_operand.hbm [shape: f32[64,128], index: 1, kind: input, shape index: {}]
  %s2 = inlined_call_operand.vmem [shape: f32[3,128], index: 2, kind: input, shape index: {}]
  %s3 = inlined_call_operand.hbm [shape: f32[2,16,128], index: 3, kind: output, shape index: {}]
  %s4 = sld [smem:[#allocation0]]
  $region53: #{tpu_custom_call.1} parent=0
    _
  %s6 = ssub.s32 1, %s4
  %s7 = scalar_select 0, %s6, %s4
  $region1: #{tpu_custom_call.1} parent=0
    #allocation2 [shape = 'u8[16384]{0}', space=vmem, size = 0x4000, scoped, tag = 'input window, operand 0']
    #allocation3 [shape = 's32[2]{0}', space=sflag, size = 0x8, scoped, tag = 'scoped memory for tpu_custom_call.1']
    #allocation4 [shape = 's32[2]{0}', space=sflag, size = 0x8, scoped, tag = 'scoped memory for tpu_custom_call.1']
    #allocation5 [shape = 'u8[32768]{0}', space=vmem, size = 0x8000, scoped, tag = 'input window, operand 1, single buffered']
    #allocation6 [shape = 's32[1]{0}', space=sflag, size = 0x4, scoped, tag = 'scoped memory for tpu_custom_call.1']
    #allocation7 [shape = 'u8[16384]{0}', space=vmem, size = 0x4000, scoped, tag = 'output window, operand 0']
    %8 = vsyncpa [#allocation3], 0
    %s9 = scalar_lea.sflag [#allocation3], 1
    %10 = vsyncpa %s9, 0
    %11 = vsyncpa [#allocation6], 0
    %12 = vsyncpa [#allocation4], 0
    %s13 = scalar_lea.sflag [#allocation4], 1
    %14 = vsyncpa %s13, 0
    loop: start=0, step=1, limit=4
    $region2: #{tpu_custom_call.1} parent=1 // loop_pre_header
      _
    $region3: #{tpu_custom_call.1} parent=1 // loop_header
      %s16 = sphi 0, %s20
      %p17 = scmp.ge.s32.totalorder %s16, 4
      %s23 = sphi 0, %s35
      %s24 = sphi 0, %s31
      %s25 = sphi 0, %s23
      %s26 = sphi 0, %s24
      %s27 = sphi 0, %s25
      %s28 = sphi 0, %s26
      %s40 = sphi 0, %s42
      %s43 = sphi 0, %s40
      %s44 = sphi 0, %s43
      %s60 = sphi 0, %s44
      %s64 = sphi 0, %s64
      %s66 = sphi 0, %s64
      %s67 = sphi 0, %s66
      %s81 = sphi 0, %s67
      %s85 = sphi 0, %s85
      %s87 = sphi 0, %s85
      %s88 = sphi 0, %s87
      %s102 = sphi 0, %s88
      %s110 = sphi 0, %s112
      %s113 = sphi 0, %s110
      %s114 = sphi 0, %s113
      %s130 = sphi 0, %s114
    $region4: #{tpu_custom_call.1} parent=1 // loop_header_branch
      %19 = sbr.rel (%p17) target = $region8
    $region5: #{tpu_custom_call.1} parent=1 // loop_body
      %s21 = ssub.s32 %s16, 1
      %s22 = ssub.s32 %s16, 2
      %s29 = sadd.s32 1, %s24
      %p30 = scmp.ge.s32.totalorder %s29, 1
      %s31 = scalar_select %p30, 0, %s29
      %s32 = sadd.s32 1, %s23
      %s33 = scalar_select %p30, %s32, %s23
      %p34 = scmp.ge.s32.totalorder %s33, 2
      %s35 = scalar_select %p34, 0, %s33
      %s36 = ssub.s32 %s23, %s35
      %s37 = ssub.s32 %s24, %s31
      %s38 = sor.u32 %s36, %s37
      %p39 = scmp.eq.s32.totalorder %s38, 0
      %s41 = sadd.s32 %s40, 1
      %s42 = scalar_select %p39, %s40, %s41
      %p45 = pneg %p39
      %p46 = scmp.eq.s32.totalorder %s16, 1
      %p47 = por %p45, %p46
      %p48 = scmp.ne.s32.totalorder %s40, %s43
      %p49 = scmp.eq.s32.totalorder %s16, 0
      %p50 = por %p48, %p49
      %p51 = scmp.ne.s32.totalorder %s40, %s43
      %p52 = scmp.eq.s32.totalorder %s21, 1
      %p53 = por %p51, %p52
      %p54 = scmp.ne.s32.totalorder %s43, %s44
      %p55 = scmp.eq.s32.totalorder %s21, 0
      %p56 = por %p54, %p55
      %p57 = scmp.ne.s32.totalorder %s43, %s44
      %p58 = scmp.eq.s32.totalorder %s22, 1
      %p59 = por %p57, %p58
      %p61 = scmp.ne.s32.totalorder %s44, %s60
      %p62 = scmp.eq.s32.totalorder %s22, 0
      %p63 = por %p61, %p62
      %s65 = sadd.s32 %s64, 1
      %p68 = scmp.eq.s32.totalorder %s16, 1
      %p69 = scmp.ne.s32.totalorder %s64, %s66
      %p70 = scmp.eq.s32.totalorder %s16, 0
      %p71 = por %p69, %p70
      %p72 = scmp.ne.s32.totalorder %s64, %s66
      %p73 = scmp.eq.s32.totalorder %s21, 1
      %p74 = por %p72, %p73
      %p75 = scmp.ne.s32.totalorder %s66, %s67
      %p76 = scmp.eq.s32.totalorder %s21, 0
      %p77 = por %p75, %p76
      %p78 = scmp.ne.s32.totalorder %s66, %s67
      %p79 = scmp.eq.s32.totalorder %s22, 1
      %p80 = por %p78, %p79
      %p82 = scmp.ne.s32.totalorder %s67, %s81
      %p83 = scmp.eq.s32.totalorder %s22, 0
      %p84 = por %p82, %p83
      %s86 = sadd.s32 %s85, 1
      %p89 = scmp.eq.s32.totalorder %s16, 1
      %p90 = scmp.ne.s32.totalorder %s85, %s87
      %p91 = scmp.eq.s32.totalorder %s16, 0
      %p92 = por %p90, %p91
      %p93 = scmp.ne.s32.totalorder %s85, %s87
      %p94 = scmp.eq.s32.totalorder %s21, 1
      %p95 = por %p93, %p94
      %p96 = scmp.ne.s32.totalorder %s87, %s88
      %p97 = scmp.eq.s32.totalorder %s21, 0
      %p98 = por %p96, %p97
      %p99 = scmp.ne.s32.totalorder %s87, %s88
      %p100 = scmp.eq.s32.totalorder %s22, 1
      %p101 = por %p99, %p100
      %p103 = scmp.ne.s32.totalorder %s88, %s102
      %p104 = scmp.eq.s32.totalorder %s22, 0
      %p105 = por %p103, %p104
      %s106 = ssub.s32 %s23, %s35
      %s107 = ssub.s32 %s24, %s31
      %s108 = sor.u32 %s106, %s107
      %p109 = scmp.eq.s32.totalorder %s108, 0
      %s111 = sadd.s32 %s110, 1
      %s112 = scalar_select %p109, %s110, %s111
      %p115 = pneg %p109
      %p116 = scmp.eq.s32.totalorder %s16, 1
      %p117 = por %p115, %p116
      %p118 = scmp.ne.s32.totalorder %s110, %s113
      %p119 = scmp.eq.s32.totalorder %s16, 0
      %p120 = por %p118, %p119
      %p121 = scmp.ne.s32.totalorder %s110, %s113
      %p122 = scmp.eq.s32.totalorder %s21, 1
      %p123 = por %p121, %p122
      %p124 = scmp.ne.s32.totalorder %s113, %s114
      %p125 = scmp.eq.s32.totalorder %s21, 0
      %p126 = por %p124, %p125
      %p127 = scmp.ne.s32.totalorder %s113, %s114
      %p128 = scmp.eq.s32.totalorder %s22, 1
      %p129 = por %p127, %p128
      %p131 = scmp.ne.s32.totalorder %s114, %s130
      %p132 = scmp.eq.s32.totalorder %s22, 0
      %p133 = por %p131, %p132
      %p134 = scmp.le.s32.totalorder 1, %s16
      %p135 = scmp.lt.s32.totalorder %s16, 3
      %p136 = pnand %p134, %p135
      %p137 = pneg %p136
      // Predicated region
      $region9: #{tpu_custom_call.1} parent=5 // pred_check
        _
      $region10: #{tpu_custom_call.1} parent=5 // pred_check_branch
        %139 = sbr.rel (%p136) target = $region12
      $region11: #{tpu_custom_call.1} parent=5 // pred_region
        %s140 = ssub.s32 %s16, 1
        // Predicated region
        $region13: #{tpu_custom_call.1} parent=11 // pred_check
          %p141 = pneg %p77
        $region14: #{tpu_custom_call.1} parent=11 // pred_check_branch
          %143 = sbr.rel (%p141) target = $region16
        $region15: #{tpu_custom_call.1} parent=11 // pred_region
          %s145 = ssub.s32 1024, 1024
          %146 = vsyncadd [#allocation6], %s145
          %s147 = sshll.u32 [#allocation5], 4
          %s148 = int_to_ptr.vmem [resolvable:$true] %s147
          %153 = dma.hbm_to_vmem [thread:$0]  %s1, 1024, %s148, [#allocation6], 128, 128, 8
        $region16: #{tpu_custom_call.1} parent=11 // pred_fallthru
          _
        // Predicated region
        $region17: #{tpu_custom_call.1} parent=11 // pred_check
          %p154 = pneg %p98
        $region18: #{tpu_custom_call.1} parent=11 // pred_check_branch
          %156 = sbr.rel (%p154) target = $region20
        $region19: #{tpu_custom_call.1} parent=11 // pred_region
          _
        $region20: #{tpu_custom_call.1} parent=11 // pred_fallthru
          _
      $region12: #{tpu_custom_call.1} parent=5 // pred_fallthru
        _
      %p157 = scmp.lt.s32.totalorder %s16, 2
      // Predicated region
      $region21: #{tpu_custom_call.1} parent=5 // pred_check
        %p158 = pneg %p157
      $region22: #{tpu_custom_call.1} parent=5 // pred_check_branch
        %160 = sbr.rel (%p158) target = $region24
      $region23: #{tpu_custom_call.1} parent=5 // pred_region
        // Predicated region
        $region25: #{tpu_custom_call.1} parent=23 // pred_check
          %p161 = pneg %p50
        $region26: #{tpu_custom_call.1} parent=23 // pred_check_branch
          %163 = sbr.rel (%p161) target = $region28
        $region27: #{tpu_custom_call.1} parent=23 // pred_region
          %s164 = sand.u32 %s40, 1
          %s165 = scalar_lea.sflag [#allocation3], %s164
          %s166 = sand.u32 %s40, 1
          %s167 = smul.addr %s166, 16
          %s168 = scalar_lea.vmem [#allocation2], %s167
          %s169 = smul.u32 2, %s24
          %s171 = ssub.s32 256, 256
          %172 = vsyncadd %s165, %s171
          %s173 = smul.addr %s23, 2
          %s174 = sadd.s32 %s169, %s173
          %s175 = smul.addr %s174, 128
          %s176 = scalar_lea.hbm %s0, %s175
          %s177 = sshll.u32 %s168, 4
          %s178 = int_to_ptr.vmem [resolvable:$true] %s177
          %183 = dma.hbm_to_vmem [thread:$0]  %s176, 256, %s178, %s165, 128, 128, 8
        $region28: #{tpu_custom_call.1} parent=23 // pred_fallthru
          _
      $region24: #{tpu_custom_call.1} parent=5 // pred_fallthru
        _
      %p184 = scmp.le.s32.totalorder 1, %s16
      %p185 = scmp.lt.s32.totalorder %s16, 3
      %p186 = pnand %p184, %p185
      %p187 = pneg %p186
      // Predicated region
      $region29: #{tpu_custom_call.1} parent=5 // pred_check
        _
      $region30: #{tpu_custom_call.1} parent=5 // pred_check_branch
        %189 = sbr.rel (%p186) target = $region32
      $region31: #{tpu_custom_call.1} parent=5 // pred_region
        %s190 = ssub.s32 %s16, 1
        %s191 = sand.u32 %s43, 1
        %s192 = scalar_lea.sflag [#allocation3], %s191
        %s193 = sand.u32 %s43, 1
        %s194 = smul.addr %s193, 16
        %s195 = scalar_lea.vmem [#allocation2], %s194
        // Predicated region
        $region33: #{tpu_custom_call.1} parent=31 // pred_check
          %p196 = pneg %p56
        $region34: #{tpu_custom_call.1} parent=31 // pred_check_branch
          %198 = sbr.rel (%p196) target = $region36
        $region35: #{tpu_custom_call.1} parent=31 // pred_region
          %199 = dma.done %s192, 256
        $region36: #{tpu_custom_call.1} parent=31 // pred_fallthru
          _
        // Predicated region
        $region37: #{tpu_custom_call.1} parent=31 // pred_check
          %p200 = pneg %p77
        $region38: #{tpu_custom_call.1} parent=31 // pred_check_branch
          %202 = sbr.rel (%p200) target = $region40
        $region39: #{tpu_custom_call.1} parent=31 // pred_region
          %203 = dma.done [#allocation6], 1024
        $region40: #{tpu_custom_call.1} parent=31 // pred_fallthru
          _
        %s204 = sand.u32 %s43, 1
        %s205 = scalar_lea.sflag [#allocation3], %s204
        %s206 = sand.u32 %s43, 1
        %s207 = smul.addr %s206, 16
        %s208 = scalar_lea.vmem [#allocation2], %s207
        %p209 = pneg %p56
        %p210 = pneg %p53
        %p211 = pneg %p77
        %p212 = pneg %p74
        %p213 = pneg %p98
        %p214 = pneg %p95
        %p215 = pneg %p126
        %p216 = pneg %p123
        %s217 = sand.u32 %s113, 1
        %s218 = scalar_lea.sflag [#allocation4], %s217
        %s219 = sand.u32 %s113, 1
        %s220 = smul.addr %s219, 16
        %s221 = scalar_lea.vmem [#allocation7], %s220
        %s222 = smul.u32 2, %s26
        %s223 = smul.u32 2, %s26
        %v224 = vld [vmem:[%s195] sm:$0xff]
        %v225 = vld [vmem:[%s195 + $0x8] sm:$0xff]
        %v226 = vld [vmem:[#allocation5] sm:$0xff]
        %v227 = vld [vmem:[#allocation5 + $0x8] sm:$0xff]
        %v228 = vld [vmem:[#allocation5 + $0x10] sm:$0xff]
        %v229 = vld [vmem:[#allocation5 + $0x18] sm:$0xff]
        %v230 = vld [vmem:[#allocation5 + $0x20] sm:$0xff]
        %v231 = vld [vmem:[#allocation5 + $0x28] sm:$0xff]
        %v232 = vld [vmem:[#allocation5 + $0x30] sm:$0xff]
        %v233 = vld [vmem:[#allocation5 + $0x38] sm:$0xff]
        %v234 = vld [vmem:[%s2] sm:$0x1]
        %v235 = vlaneseq
        %v236 = vshrl.u32 %v235, 7
        %v237 = vsub.s32 0, %v236
        %v238 = vrot.slane %v234, %v237
        %vm239 = vcmask 523264
        %v241 = vsel %vm239, %v224, 0
        %v244 = vsel %vm239, %v225, 0
        %246 = vmatprep.subr.mxu0 0.0
        %247 = vmatpush1.msra.mxu0 %v226
        %248 = vmatprep.subr.mxu0 0.0
        %249 = vmatpush1.msra.mxu0 %v227
        %250 = vmatprep.subr.mxu0 0.0
        %251 = vmatpush1.msra.mxu0 %v228
        %252 = vmatprep.subr.mxu0 0.0
        %253 = vmatpush1.msra.mxu0 %v229
        %254 = vmatprep.subr.mxu0 0.0
        %255 = vmatpush1.msra.mxu0 %v230
        %256 = vmatprep.subr.mxu0 0.0
        %257 = vmatpush1.msra.mxu0 %v231
        %258 = vmatprep.subr.mxu0 0.0
        %259 = vmatpush1.msra.mxu0 %v232
        %260 = vmatprep.subr.mxu0 0.0
        %261 = vmatpush1.msra.mxu0 %v233
        %262 = vmatprep.subr.mxu0 0.0
        %263 = vmatpush1.msra.mxu0 0.0
        %264 = vmatprep.subr.mxu0 0.0
        %265 = vmatpush1.msra.mxu0 0.0
        %266 = vmatprep.subr.mxu0 0.0
        %267 = vmatpush1.msra.mxu0 0.0
        %268 = vmatprep.subr.mxu0 0.0
        %269 = vmatpush1.msra.mxu0 0.0
        %270 = vmatprep.subr.mxu0 0.0
        %271 = vmatpush1.msra.mxu0 0.0
        %272 = vmatprep.subr.mxu0 0.0
        %273 = vmatpush1.msra.mxu0 0.0
        %274 = vmatprep.subr.mxu0 0.0
        %275 = vmatpush1.msra.mxu0 0.0
        %276 = vmatprep.subr.mxu0 0.0
        %277 = vmatpush1.msra.mxu0 0.0
        %278 = vmatprep.subr.mxu0 0.0
        %279 = vmatpush1.msra.mxu0 0.0
        %280 = vmatprep.subr.mxu0 0.0
        %281 = vmatpush1.msra.mxu0 0.0
        %282 = vmatprep.subr.mxu0 0.0
        %283 = vmatpush1.msra.mxu0 0.0
        %284 = vmatprep.subr.mxu0 0.0
        %285 = vmatpush1.msra.mxu0 0.0
        %286 = vmatprep.subr.mxu0 0.0
        %287 = vmatpush1.msra.mxu0 0.0
        %288 = vmatprep.subr.mxu0 0.0
        %289 = vmatpush1.msra.mxu0 0.0
        %290 = vmatprep.subr.mxu0 0.0
        %291 = vmatpush1.msra.mxu0 0.0
        %292 = vmatprep.subr.mxu0 0.0
        %293 = vmatpush1.msra.mxu0 0.0
        %294 = vmatprep.subr.mxu0 0.0
        %295 = vmatpush1.msra.mxu0 0.0
        %296 = vmatprep.subr.mxu0 0.0
        %297 = vmatpush1.msra.mxu0 0.0
        %298 = vmatprep.subr.mxu0 0.0
        %299 = vmatpush1.msra.mxu0 0.0
        %300 = vmatprep.subr.mxu0 0.0
        %301 = vmatpush1.msra.mxu0 0.0
        %302 = vmatprep.subr.mxu0 0.0
        %303 = vmatpush1.msra.mxu0 0.0
        %304 = vmatprep.subr.mxu0 0.0
        %305 = vmatpush1.msra.mxu0 0.0
        %306 = vmatprep.subr.mxu0 0.0
        %307 = vmatpush1.msra.mxu0 0.0
        %308 = vmatprep.subr.mxu0 0.0
        %309 = vmatpush1.msra.mxu0 0.0
        %310 = vmatprep.mubr.f32.mxu0 0.0
        %311 = vmatmul.mubr.f32.gmra.mrb[0].mxu0 %v241
        %v312 = vpop.f32.mrb[0].mxu0
        %v313 = vadd.f32 %v238, %v312
        %v314 = vpop.f32.mrb[0].mxu0
        %315 = vmatprep.mubr.f32.mxu0 0.0
        %316 = vmatmul.mubr.f32.gmra.mrb[0].mxu0 %v244
        %v317 = vpop.f32.mrb[0].mxu0
        %v318 = vadd.f32 %v238, %v317
        %v319 = vpop.f32.mrb[0].mxu0
        %320 = vdwg.mxu0
        %321 = vadd.xlane.f32.xlu0 %v313
        %v322 = vpop.xlane.xlu0 %321
        %323 = vadd.xlane.f32.xlu0 %v318
        %v324 = vpop.xlane.xlu0 %323
        %v325 = vmul.f32 %v322, 0.03125
        %v326 = vmul.f32 %v324, 0.03125
        %v327 = vsub.f32 %v313, %v325
        %v328 = vsub.f32 %v318, %v326
        %v329 = vmul.f32 %v327, %v327
        %v330 = vmul.f32 %v328, %v328
        %331 = vadd.xlane.f32.xlu0 %v329
        %v332 = vpop.xlane.xlu0 %331
        %333 = vadd.xlane.f32.xlu0 %v330
        %v334 = vpop.xlane.xlu0 %333
        %v335 = vmul.f32 %v325, 96.0
        %v336 = vmul.f32 %v326, 96.0
        %v337 = vmul.f32 %v335, %v325
        %v338 = vmul.f32 %v336, %v326
        %v339 = vsub.f32 %v332, %v337
        %v340 = vsub.f32 %v334, %v338
        %v341 = vmul.f32 %v339, 0.03125
        %v342 = vmul.f32 %v340, 0.03125
        %v343 = vadd.f32 %v341, 1e-05
        %v344 = vadd.f32 %v342, 1e-05
        %v345 = vrsqrt.pop %v343
        %v346 = vrsqrt.pop %v344
        %v347 = vmul.f32 %v327, %v345
        %v348 = vmul.f32 %v328, %v346
        %v349 = vld [vmem:[%s2 + $0x1] sm:$0x1]
        %v350 = vlaneseq
        %v351 = vshrl.u32 %v350, 7
        %v352 = vsub.s32 0, %v351
        %v353 = vrot.slane %v349, %v352
        %v354 = vmul.f32 %v347, %v353
        %v355 = vmul.f32 %v348, %v353
        %v356 = vld [vmem:[%s2 + $0x2] sm:$0x1]
        %v357 = vlaneseq
        %v358 = vshrl.u32 %v357, 7
        %v359 = vsub.s32 0, %v358
        %v360 = vrot.slane %v356, %v359
        %v361 = vadd.f32 %v354, %v360
        %v362 = vadd.f32 %v355, %v360
        %363 = vst [vmem:[%s221] sm:$0xff] %v361
        %364 = vst [vmem:[%s221 + $0x8] sm:$0xff] %v362
        %s365 = sand.u32 %s113, 1
        %s366 = scalar_lea.sflag [#allocation4], %s365
        %s367 = sand.u32 %s113, 1
        %s368 = smul.addr %s367, 16
        %s369 = scalar_lea.vmem [#allocation7], %s368
        // Predicated region
        $region41: #{tpu_custom_call.1} parent=31 // pred_check
          %p370 = pneg %p123
        $region42: #{tpu_custom_call.1} parent=31 // pred_check_branch
          %372 = sbr.rel (%p370) target = $region44
        $region43: #{tpu_custom_call.1} parent=31 // pred_region
          %s373 = smul.u32 2, %s26
          %s375 = ssub.s32 256, 256
          %376 = vsyncadd %s366, %s375
          %s377 = smul.addr %s25, 2
          %s378 = sadd.s32 %s373, %s377
          %s379 = smul.addr %s378, 128
          %s380 = scalar_lea.hbm %s3, %s379
          %s381 = sshll.u32 %s369, 4
          %s382 = int_to_ptr.vmem [resolvable:$true] %s381
          %387 = dma.vmem_to_hbm [thread:$0]  %s382, 256, %s380, %s366, 128, 128, 8
        $region44: #{tpu_custom_call.1} parent=31 // pred_fallthru
          _
      $region32: #{tpu_custom_call.1} parent=5 // pred_fallthru
        _
      %p388 = scmp.le.s32.totalorder 2, %s16
      // Predicated region
      $region45: #{tpu_custom_call.1} parent=5 // pred_check
        %p389 = pneg %p388
      $region46: #{tpu_custom_call.1} parent=5 // pred_check_branch
        %391 = sbr.rel (%p389) target = $region48
      $region47: #{tpu_custom_call.1} parent=5 // pred_region
        %s392 = ssub.s32 %s16, 2
        // Predicated region
        $region49: #{tpu_custom_call.1} parent=47 // pred_check
          %p393 = pneg %p129
        $region50: #{tpu_custom_call.1} parent=47 // pred_check_branch
          %395 = sbr.rel (%p393) target = $region52
        $region51: #{tpu_custom_call.1} parent=47 // pred_region
          %s396 = sand.u32 %s114, 1
          %s397 = scalar_lea.sflag [#allocation4], %s396
          %s398 = sand.u32 %s114, 1
          %s399 = smul.addr %s398, 16
          %s400 = scalar_lea.vmem [#allocation7], %s399
          %401 = dma.done %s397, 256
        $region52: #{tpu_custom_call.1} parent=47 // pred_fallthru
          _
      $region48: #{tpu_custom_call.1} parent=5 // pred_fallthru
        _
    $region6: #{tpu_custom_call.1} parent=1 // loop_footer
      %s20 = sadd.s32 1, %s16
    $region7: #{tpu_custom_call.1} parent=1 // loop_footer_branch
      %15 = sbr.rel target = $region3
    $region8: #{tpu_custom_call.1} parent=1 // loop_exit
      _
    %402 = vsyncpa [#allocation3], 1
    %s403 = scalar_lea.sflag [#allocation3], 1
    %404 = vsyncpa %s403, 1
    %405 = vsyncpa [#allocation6], 1
    %406 = vsyncpa [#allocation4], 1
    %s407 = scalar_lea.sflag [#allocation4], 1
    %408 = vsyncpa %s407, 1

</llo_original>
